<compile_context>
chip_gen: v7x
topology: tpu7x:2x2x1
jax: 0.10.0
libtpu: 0.0.40
codegen_flags: <defaults>
</compile_context>

<pallas_src>
import jax
import jax.numpy as jnp
from jax import lax
from jax.experimental import pallas as pl
from jax.experimental.pallas import tpu as pltpu

EPS = 1e-5


def _make_kernel(batch_block, lout, cin, cout, s0, has_shortcut, compute_dtype):
    m = batch_block * lout

    def kernel(xp_ref, w1_ref, b1_ref, w2_ref, b2_ref, *rest):
        if has_shortcut:
            wsc_ref, bsc_ref, o_ref = rest
        else:
            (o_ref,) = rest

        # ---- gather the three conv1 taps directly at the output stride ----
        # xp_ref block: (batch_block, L+2, Cin), length zero-padded by one row on each
        # side, so tap k of output row l is padded row l*s0 + k (always in bounds).
        taps = []
        for k in range(3):
            if s0 == 1:
                t = xp_ref[:, pl.ds(k, lout), :]
            else:
                t = xp_ref[:, pl.ds(k, lout, stride=s0), :]
            taps.append(t.astype(jnp.float32))

        # ---- conv1 (k=3, pad=1, stride s0) + BN1 (scale folded into w1) + ReLU ----
        # One matmul with K = 3*Cin and M = batch_block*Lout (taps stacked on lanes,
        # batch folded into the sublane/M dimension).
        x1 = jnp.concatenate(taps, axis=-1).reshape(m, 3 * cin)
        h = jnp.dot(x1.astype(compute_dtype), w1_ref[...],
                    preferred_element_type=jnp.float32)
        h = jnp.maximum(h + b1_ref[...], 0.0)                      # (m, Cout) f32

        # ---- conv2 (k=3, pad=1, stride 1) + BN2 (scale folded into w2) ----
        # Halo built in registers; no VMEM scratch round-trip.
        h3 = h.reshape(batch_block, lout, cout)
        zrow = jnp.zeros((batch_block, 1, cout), jnp.float32)
        hpad = jnp.concatenate([zrow, h3, zrow], axis=1)           # (batch_block, Lout+2, Cout)
        h_taps = jnp.concatenate([hpad[:, k:k + lout, :] for k in range(3)], axis=-1)
        out = jnp.dot(h_taps.reshape(m, 3 * cout).astype(compute_dtype), w2_ref[...],
                      preferred_element_type=jnp.float32)
        out = out + b2_ref[...]

        # ---- shortcut ----
        center = taps[1].reshape(m, cin)   # x at the tap centres == stride-s0 downsample
        if has_shortcut:
            sc = jnp.dot(center.astype(compute_dtype), wsc_ref[...],
                         preferred_element_type=jnp.float32) + bsc_ref[...]
        else:
            sc = center                    # identity path (Cin == Cout, s0 == 1)

        out = jnp.maximum(out + sc, 0.0)
        o_ref[...] = out.reshape(batch_block, lout, cout).astype(o_ref.dtype)

    return kernel


def _fold_bn(bn):
    scale = bn["gamma"] / jnp.sqrt(bn["var"] + EPS)
    bias = bn["beta"] - bn["mean"] * scale
    return scale.astype(jnp.float32), bias.astype(jnp.float32)


def _prep_conv3(w, scale, compute_dtype):
    # Torch layout (Cout, Cin, 3) -> (3*Cin, Cout) with BN scale folded into the columns.
    cout, cin, k = w.shape
    wf = jnp.transpose(w, (2, 1, 0)).reshape(k * cin, cout) * scale[None, :]
    return wf.astype(compute_dtype)


def basic_block_forward(x_ncl, params, stride, *, compute_dtype=jnp.float32,
                        batch_block=None):
    """x_ncl: (N, Cin, L) float32 (PyTorch layout).  Returns (N, Cout, Lout)."""
    N, Cin, L = x_ncl.shape
    s0, s1 = stride
    # The residual add only type-checks when conv2 preserves length (standard BasicBlock).
    assert s1 == 1, "BasicBlock requires stride[1] == 1 (residual shapes must match)"
    Cout = params["w1"].shape[0]
    has_shortcut = (s0 != 1) or (Cin != Cout)
    if not has_shortcut:
        assert Cin == Cout and s0 == 1
    Lout = (L - 1) // s0 + 1                     # length after conv1 / shortcut / output

    # Batch block: fold several batch items into the matmul M dimension (target ~256 rows),
    # kept a divisor of N so the grid is exact.
    if batch_block is None:
        batch_block = max(1, -(-256 // Lout))    # ceil(256 / Lout)
    batch_block = max(1, min(batch_block, N))
    while N % batch_block:
        batch_block -= 1

    # Fold BN scales into the conv weights (kernel only adds the bias).
    sc1, b1 = _fold_bn(params["bn1"])
    sc2, b2 = _fold_bn(params["bn2"])
    w1 = _prep_conv3(params["w1"], sc1, compute_dtype)          # (3*Cin,  Cout)
    w2 = _prep_conv3(params["w2"], sc2, compute_dtype)          # (3*Cout, Cout)
    b1 = b1.reshape(1, Cout)
    b2 = b2.reshape(1, Cout)

    # NCL -> NLC with a 1-row zero halo on each side of the length axis.  The transpose is
    # required for the lane=channel layout anyway; XLA fuses the pad into the same copy.
    x_nlc = jnp.transpose(x_ncl, (0, 2, 1))
    x_pad = jnp.pad(x_nlc, ((0, 0), (1, 1), (0, 0)))

    inputs = [x_pad, w1, b1, w2, b2]
    in_specs = [
        pl.BlockSpec((batch_block, L + 2, Cin), lambda n: (n, 0, 0)),
        pl.BlockSpec((3 * Cin, Cout), lambda n: (0, 0)),
        pl.BlockSpec((1, Cout), lambda n: (0, 0)),
        pl.BlockSpec((3 * Cout, Cout), lambda n: (0, 0)),
        pl.BlockSpec((1, Cout), lambda n: (0, 0)),
    ]
    if has_shortcut:
        ssc, bsc = _fold_bn(params["bnsc"])
        wsc = (jnp.transpose(params["wsc"][:, :, 0], (1, 0)) * ssc[None, :]).astype(compute_dtype)
        inputs += [wsc, bsc.reshape(1, Cout)]
        in_specs += [
            pl.BlockSpec((Cin, Cout), lambda n: (0, 0)),
            pl.BlockSpec((1, Cout), lambda n: (0, 0)),
        ]

    kernel = _make_kernel(batch_block, Lout, Cin, Cout, s0, has_shortcut, compute_dtype)

    out_nlc = pl.pallas_call(
        kernel,
        out_shape=jax.ShapeDtypeStruct((N, Lout, Cout), x_ncl.dtype),
        grid=(N // batch_block,),
        in_specs=in_specs,
        out_specs=pl.BlockSpec((batch_block, Lout, Cout), lambda n: (n, 0, 0)),
        compiler_params=pltpu.CompilerParams(dimension_semantics=("parallel",)),
    )(*inputs)

    return jnp.transpose(out_nlc, (0, 2, 1))                     # back to NCL


# ---------------- pure-JAX reference (for correctness check) ----------------
def reference_forward(x_ncl, p, stride):
    def conv1d(x, w, s, pad):
        return lax.conv_general_dilated(
            x, w, (s,), [(pad, pad)], dimension_numbers=("NCH", "OIH", "NCH"))

    def bn(x, bn_p):
        scale = bn_p["gamma"] / jnp.sqrt(bn_p["var"] + EPS)
        bias = bn_p["beta"] - bn_p["mean"] * scale
        return x * scale[None, :, None] + bias[None, :, None]

    h = jax.nn.relu(bn(conv1d(x_ncl, p["w1"], stride[0], 1), p["bn1"]))
    out = bn(conv1d(h, p["w2"], stride[1], 1), p["bn2"])
    if "wsc" in p:
        sc = bn(conv1d(x_ncl, p["wsc"], stride[0], 0), p["bnsc"])
    else:
        sc = x_ncl
    return jax.nn.relu(out + sc)


def init_params(key, in_channels, out_channels, has_shortcut):
    ks = jax.random.split(key, 16)

    def bn_params(k):
        k1, k2, k3, k4 = jax.random.split(k, 4)
        return {
            "gamma": jax.random.uniform(k1, (out_channels,), jnp.float32, 0.5, 1.5),
            "beta": 0.1 * jax.random.normal(k2, (out_channels,), jnp.float32),
            "mean": 0.1 * jax.random.normal(k3, (out_channels,), jnp.float32),
            "var": jax.random.uniform(k4, (out_channels,), jnp.float32, 0.5, 1.5),
        }

    p = {
        "w1": 0.2 * jax.random.normal(ks[0], (out_channels, in_channels, 3), jnp.float32),
        "bn1": bn_params(ks[1]),
        "w2": 0.2 * jax.random.normal(ks[2], (out_channels, out_channels, 3), jnp.float32),
        "bn2": bn_params(ks[3]),
    }
    if has_shortcut:
        p["wsc"] = 0.2 * jax.random.normal(ks[4], (out_channels, in_channels, 1), jnp.float32)
        p["bnsc"] = bn_params(ks[5])
    return p


if __name__ == "__main__":
    key = jax.random.PRNGKey(0)

    cases = [
        # identity shortcut, stride 1, grid of 2 batch blocks
        dict(N=4, Cin=8, Cout=8, L=16, stride=(1, 1),
             compute_dtype=jnp.float32, batch_block=2, atol=1e-4, rtol=1e-4),
        # conv shortcut + strided first conv
        dict(N=4, Cin=4, Cout=8, L=16, stride=(2, 1),
             compute_dtype=jnp.float32, batch_block=None, atol=1e-4, rtol=1e-4),
        # same, with bf16 matmul operands (loose tolerance)
        dict(N=4, Cin=4, Cout=8, L=16, stride=(2, 1),
             compute_dtype=jnp.bfloat16, batch_block=None, atol=1e-1, rtol=1e-1),
    ]

    for i, c in enumerate(cases):
        kx, kp = jax.random.split(jax.random.fold_in(key, i))
        has_sc = (c["stride"][0] != 1) or (c["Cin"] != c["Cout"])
        x = jax.random.normal(kx, (c["N"], c["Cin"], c["L"]), jnp.float32)   # PyTorch NCL
        params = init_params(kp, c["Cin"], c["Cout"], has_sc)

        out = basic_block_forward(x, params, c["stride"],
                                  compute_dtype=c["compute_dtype"],
                                  batch_block=c["batch_block"])
        out = jax.block_until_ready(out)

        ref = reference_forward(x, params, c["stride"])
        assert out.shape == ref.shape, (i, out.shape, ref.shape)
        max_err = float(jnp.max(jnp.abs(out - ref)))
        assert jnp.allclose(out, ref, atol=c["atol"], rtol=c["rtol"]), (i, max_err)

    print("KERNEL_OK")
</pallas_src>

<mosaic_0001>
module attributes {stable_mosaic.version = 11 : i64} {
  func.func @kernel(%arg0: i32, %arg1: memref<2x18x8xf32, #tpu.memory_space<vmem>>, %arg2: memref<24x8xf32, #tpu.memory_space<vmem>>, %arg3: memref<1x8xf32, #tpu.memory_space<vmem>>, %arg4: memref<24x8xf32, #tpu.memory_space<vmem>>, %arg5: memref<1x8xf32, #tpu.memory_space<vmem>>, %arg6: memref<2x16x8xf32, #tpu.memory_space<vmem>>) attributes {dimension_semantics = [#tpu.dimension_semantics<parallel>], iteration_bounds = array<i64: 2>, scalar_prefetch = 0 : i64, scratch_operands = 0 : i64, tpu.core_type = #tpu.core_type<tc>, window_params = [{transform_indices = @transform_0, window_bounds = array<i64: 2, 18, 8>}, {pipeline_mode = #tpu.pipeline_mode<synchronous>, transform_indices = @transform_1, window_bounds = array<i64: 24, 8>}, {pipeline_mode = #tpu.pipeline_mode<synchronous>, transform_indices = @transform_2, window_bounds = array<i64: 1, 8>}, {pipeline_mode = #tpu.pipeline_mode<synchronous>, transform_indices = @transform_3, window_bounds = array<i64: 24, 8>}, {pipeline_mode = #tpu.pipeline_mode<synchronous>, transform_indices = @transform_4, window_bounds = array<i64: 1, 8>}, {transform_indices = @transform_5, window_bounds = array<i64: 2, 16, 8>}]} {
    %c0 = arith.constant 0 : index
    %c0_0 = arith.constant 0 : index
    %c0_1 = arith.constant 0 : index
    %0 = vector.load %arg1[%c0, %c0_0, %c0_1] : memref<2x18x8xf32, #tpu.memory_space<vmem>>, vector<2x16x8xf32>
    %c0_2 = arith.constant 0 : index
    %c1 = arith.constant 1 : index
    %c0_3 = arith.constant 0 : index
    %1 = vector.load %arg1[%c0_2, %c1, %c0_3] : memref<2x18x8xf32, #tpu.memory_space<vmem>>, vector<2x16x8xf32>
    %c0_4 = arith.constant 0 : index
    %c2 = arith.constant 2 : index
    %c0_5 = arith.constant 0 : index
    %2 = vector.load %arg1[%c0_4, %c2, %c0_5] : memref<2x18x8xf32, #tpu.memory_space<vmem>>, vector<2x16x8xf32>
    %3 = tpu.concatenate %0, %1, %2 in 2 : vector<2x16x8xf32>, vector<2x16x8xf32>, vector<2x16x8xf32> -> vector<2x16x24xf32>
    %4 = vector.shape_cast %3 : vector<2x16x24xf32> to vector<32x24xf32>
    %c0_6 = arith.constant 0 : index
    %c0_7 = arith.constant 0 : index
    %5 = vector.load %arg2[%c0_6, %c0_7] : memref<24x8xf32, #tpu.memory_space<vmem>>, vector<24x8xf32>
    %cst = arith.constant dense<0.000000e+00> : vector<32x8xf32>
    %6 = tpu.matmul %4, %5, %cst {dimension_numbers = #tpu.dot_dimension_numbers<[1], [0], [0], [1], [0, 0, 1, 1], [], []>} : vector<32x24xf32>, vector<24x8xf32>, vector<32x8xf32> -> vector<32x8xf32>
    %c0_8 = arith.constant 0 : index
    %c0_9 = arith.constant 0 : index
    %7 = vector.load %arg3[%c0_8, %c0_9] : memref<1x8xf32, #tpu.memory_space<vmem>>, vector<1x8xf32>
    %8 = vector.broadcast %7 : vector<1x8xf32> to vector<32x8xf32>
    %9 = arith.addf %6, %8 : vector<32x8xf32>
    %cst_10 = arith.constant 0.000000e+00 : f32
    %10 = vector.broadcast %cst_10 : f32 to vector<32x8xf32>
    %11 = arith.maximumf %9, %10 : vector<32x8xf32>
    %12 = vector.shape_cast %11 : vector<32x8xf32> to vector<2x16x8xf32>
    %cst_11 = arith.constant 0.000000e+00 : f32
    %13 = vector.broadcast %cst_11 : f32 to vector<2x1x8xf32>
    %14 = tpu.concatenate %13, %12, %13 in 1 : vector<2x1x8xf32>, vector<2x16x8xf32>, vector<2x1x8xf32> -> vector<2x18x8xf32>
    %15 = vector.extract_strided_slice %14 {offsets = [0, 0, 0], sizes = [2, 16, 8], strides = [1, 1, 1]} : vector<2x18x8xf32> to vector<2x16x8xf32>
    %16 = vector.extract_strided_slice %14 {offsets = [0, 1, 0], sizes = [2, 16, 8], strides = [1, 1, 1]} : vector<2x18x8xf32> to vector<2x16x8xf32>
    %17 = vector.extract_strided_slice %14 {offsets = [0, 2, 0], sizes = [2, 16, 8], strides = [1, 1, 1]} : vector<2x18x8xf32> to vector<2x16x8xf32>
    %18 = tpu.concatenate %15, %16, %17 in 2 : vector<2x16x8xf32>, vector<2x16x8xf32>, vector<2x16x8xf32> -> vector<2x16x24xf32>
    %19 = vector.shape_cast %18 : vector<2x16x24xf32> to vector<32x24xf32>
    %c0_12 = arith.constant 0 : index
    %c0_13 = arith.constant 0 : index
    %20 = vector.load %arg4[%c0_12, %c0_13] : memref<24x8xf32, #tpu.memory_space<vmem>>, vector<24x8xf32>
    %cst_14 = arith.constant dense<0.000000e+00> : vector<32x8xf32>
    %21 = tpu.matmul %19, %20, %cst_14 {dimension_numbers = #tpu.dot_dimension_numbers<[1], [0], [0], [1], [0, 0, 1, 1], [], []>} : vector<32x24xf32>, vector<24x8xf32>, vector<32x8xf32> -> vector<32x8xf32>
    %c0_15 = arith.constant 0 : index
    %c0_16 = arith.constant 0 : index
    %22 = vector.load %arg5[%c0_15, %c0_16] : memref<1x8xf32, #tpu.memory_space<vmem>>, vector<1x8xf32>
    %23 = vector.broadcast %22 : vector<1x8xf32> to vector<32x8xf32>
    %24 = arith.addf %21, %23 : vector<32x8xf32>
    %25 = vector.shape_cast %1 : vector<2x16x8xf32> to vector<32x8xf32>
    %26 = arith.addf %24, %25 : vector<32x8xf32>
    %cst_17 = arith.constant 0.000000e+00 : f32
    %27 = vector.broadcast %cst_17 : f32 to vector<32x8xf32>
    %28 = arith.maximumf %26, %27 : vector<32x8xf32>
    %29 = vector.shape_cast %28 : vector<32x8xf32> to vector<2x16x8xf32>
    %c0_18 = arith.constant 0 : index
    %c0_19 = arith.constant 0 : index
    %c0_20 = arith.constant 0 : index
    %30 = vector.load %arg6[%c0_18, %c0_19, %c0_20] : memref<2x16x8xf32, #tpu.memory_space<vmem>>, vector<2x16x8xf32>
    tpu.vector_store %arg6[%c0_18, %c0_19, %c0_20], %29 {strides = array<i32>} : memref<2x16x8xf32, #tpu.memory_space<vmem>>, vector<2x16x8xf32>,
    return
  }
  func.func @transform_0(%arg0: i32) -> (i32, i32, i32) {
    %c0_i32 = arith.constant 0 : i32
    %c0_i32_0 = arith.constant 0 : i32
    %c0_i32_1 = arith.constant 0 : i32
    return %arg0, %c0_i32, %c0_i32_0 : i32, i32, i32
  }
  func.func @transform_1(%arg0: i32) -> (i32, i32) {
    %c0_i32 = arith.constant 0 : i32
    %c0_i32_0 = arith.constant 0 : i32
    %c0_i32_1 = arith.constant 0 : i32
    return %c0_i32, %c0_i32_0 : i32, i32
  }
  func.func @transform_2(%arg0: i32) -> (i32, i32) {
    %c0_i32 = arith.constant 0 : i32
    %c0_i32_0 = arith.constant 0 : i32
    %c0_i32_1 = arith.constant 0 : i32
    return %c0_i32, %c0_i32_0 : i32, i32
  }
  func.func @transform_3(%arg0: i32) -> (i32, i32) {
    %c0_i32 = arith.constant 0 : i32
    %c0_i32_0 = arith.constant 0 : i32
    %c0_i32_1 = arith.constant 0 : i32
    return %c0_i32, %c0_i32_0 : i32, i32
  }
  func.func @transform_4(%arg0: i32) -> (i32, i32) {
    %c0_i32 = arith.constant 0 : i32
    %c0_i32_0 = arith.constant 0 : i32
    %c0_i32_1 = arith.constant 0 : i32
    return %c0_i32, %c0_i32_0 : i32, i32
  }
  func.func @transform_5(%arg0: i32) -> (i32, i32, i32) {
    %c0_i32 = arith.constant 0 : i32
    %c0_i32_0 = arith.constant 0 : i32
    %c0_i32_1 = arith.constant 0 : i32
    return %arg0, %c0_i32, %c0_i32_0 : i32, i32, i32
  }
}

</mosaic_0001>

<llo_original>
// kernel: tpu_custom_call.1
$region0: #{tpu_custom_call.1}
  #allocation0 [shape = 'u32[]', space=smem, size = 0x4, offset = 0x4, fixed_abs, tag = 'smem constant byte address 0x4 - core index']
  #allocation1 [shape = 'u32[144,128]{1,0:T(1,128)}', space=vmem, size = 0x12000, scoped, tag = 'internal scratch']
  %s0 = inlined_call_operand.vmem [shape: f32[4,18,8], index: 0, kind: input, shape index: {}]
  %s1 = inlined_call_operand.vmem [shape: f32[24,8], index: 1, kind: input, shape index: {}]
  %s2 = inlined_call_operand.vmem [shape: f32[1,8], index: 2, kind: input, shape index: {}]
  %s3 = inlined_call_operand.vmem [shape: f32[24,8], index: 3, kind: input, shape index: {}]
  %s4 = inlined_call_operand.vmem [shape: f32[1,8], index: 4, kind: input, shape index: {}]
  %s5 = inlined_call_operand.vmem [shape: f32[4,16,8], index: 5, kind: output, shape index: {}]
  %s6 = sld [smem:[#allocation0]]
  $region53: #{tpu_custom_call.1} parent=0
    _
  %s8 = ssub.s32 1, %s6
  %s9 = scalar_select 0, %s8, %s6
  loop: start=0, step=1, limit=4
  $region2: #{tpu_custom_call.1} parent=0 // loop_pre_header
    _
  $region3: #{tpu_custom_call.1} parent=0 // loop_header
    %s11 = sphi 0, %s15
    %p12 = scmp.ge.s32.totalorder %s11, 4
    %s21 = sphi 0, %s23
    %s24 = sphi 0, %s21
    %s25 = sphi 0, %s24
    %s41 = sphi 0, %s25
    %s45 = sphi 0, %s45
    %s47 = sphi 0, %s45
    %s48 = sphi 0, %s47
    %s62 = sphi 0, %s48
    %s66 = sphi 0, %s66
    %s68 = sphi 0, %s66
    %s69 = sphi 0, %s68
    %s83 = sphi 0, %s69
    %s87 = sphi 0, %s87
    %s89 = sphi 0, %s87
    %s90 = sphi 0, %s89
    %s104 = sphi 0, %s90
    %s108 = sphi 0, %s108
    %s110 = sphi 0, %s108
    %s111 = sphi 0, %s110
    %s125 = sphi 0, %s111
    %s131 = sphi 0, %s133
    %s134 = sphi 0, %s131
    %s135 = sphi 0, %s134
    %s151 = sphi 0, %s135
  $region4: #{tpu_custom_call.1} parent=0 // loop_header_branch
    %14 = sbr.rel (%p12) target = $region8
  $region5: #{tpu_custom_call.1} parent=0 // loop_body
    %s16 = ssub.s32 %s11, 1
    %s17 = ssub.s32 %s11, 2
    %s18 = sadd.s32 %s11, 1
    %s19 = ssub.s32 %s11, %s18
    %p20 = scmp.eq.s32.totalorder %s19, 0
    %s22 = sadd.s32 %s21, 1
    %s23 = scalar_select %p20, %s21, %s22
    %p26 = pneg %p20
    %p27 = scmp.eq.s32.totalorder %s11, 1
    %p28 = por %p26, %p27
    %p29 = scmp.ne.s32.totalorder %s21, %s24
    %p30 = scmp.eq.s32.totalorder %s11, 0
    %p31 = por %p29, %p30
    %p32 = scmp.ne.s32.totalorder %s21, %s24
    %p33 = scmp.eq.s32.totalorder %s16, 1
    %p34 = por %p32, %p33
    %p35 = scmp.ne.s32.totalorder %s24, %s25
    %p36 = scmp.eq.s32.totalorder %s16, 0
    %p37 = por %p35, %p36
    %p38 = scmp.ne.s32.totalorder %s24, %s25
    %p39 = scmp.eq.s32.totalorder %s17, 1
    %p40 = por %p38, %p39
    %p42 = scmp.ne.s32.totalorder %s25, %s41
    %p43 = scmp.eq.s32.totalorder %s17, 0
    %p44 = por %p42, %p43
    %s46 = sadd.s32 %s45, 1
    %p49 = scmp.eq.s32.totalorder %s11, 1
    %p50 = scmp.ne.s32.totalorder %s45, %s47
    %p51 = scmp.eq.s32.totalorder %s11, 0
    %p52 = por %p50, %p51
    %p53 = scmp.ne.s32.totalorder %s45, %s47
    %p54 = scmp.eq.s32.totalorder %s16, 1
    %p55 = por %p53, %p54
    %p56 = scmp.ne.s32.totalorder %s47, %s48
    %p57 = scmp.eq.s32.totalorder %s16, 0
    %p58 = por %p56, %p57
    %p59 = scmp.ne.s32.totalorder %s47, %s48
    %p60 = scmp.eq.s32.totalorder %s17, 1
    %p61 = por %p59, %p60
    %p63 = scmp.ne.s32.totalorder %s48, %s62
    %p64 = scmp.eq.s32.totalorder %s17, 0
    %p65 = por %p63, %p64
    %s67 = sadd.s32 %s66, 1
    %p70 = scmp.eq.s32.totalorder %s11, 1
    %p71 = scmp.ne.s32.totalorder %s66, %s68
    %p72 = scmp.eq.s32.totalorder %s11, 0
    %p73 = por %p71, %p72
    %p74 = scmp.ne.s32.totalorder %s66, %s68
    %p75 = scmp.eq.s32.totalorder %s16, 1
    %p76 = por %p74, %p75
    %p77 = scmp.ne.s32.totalorder %s68, %s69
    %p78 = scmp.eq.s32.totalorder %s16, 0
    %p79 = por %p77, %p78
    %p80 = scmp.ne.s32.totalorder %s68, %s69
    %p81 = scmp.eq.s32.totalorder %s17, 1
    %p82 = por %p80, %p81
    %p84 = scmp.ne.s32.totalorder %s69, %s83
    %p85 = scmp.eq.s32.totalorder %s17, 0
    %p86 = por %p84, %p85
    %s88 = sadd.s32 %s87, 1
    %p91 = scmp.eq.s32.totalorder %s11, 1
    %p92 = scmp.ne.s32.totalorder %s87, %s89
    %p93 = scmp.eq.s32.totalorder %s11, 0
    %p94 = por %p92, %p93
    %p95 = scmp.ne.s32.totalorder %s87, %s89
    %p96 = scmp.eq.s32.totalorder %s16, 1
    %p97 = por %p95, %p96
    %p98 = scmp.ne.s32.totalorder %s89, %s90
    %p99 = scmp.eq.s32.totalorder %s16, 0
    %p100 = por %p98, %p99
    %p101 = scmp.ne.s32.totalorder %s89, %s90
    %p102 = scmp.eq.s32.totalorder %s17, 1
    %p103 = por %p101, %p102
    %p105 = scmp.ne.s32.totalorder %s90, %s104
    %p106 = scmp.eq.s32.totalorder %s17, 0
    %p107 = por %p105, %p106
    %s109 = sadd.s32 %s108, 1
    %p112 = scmp.eq.s32.totalorder %s11, 1
    %p113 = scmp.ne.s32.totalorder %s108, %s110
    %p114 = scmp.eq.s32.totalorder %s11, 0
    %p115 = por %p113, %p114
    %p116 = scmp.ne.s32.totalorder %s108, %s110
    %p117 = scmp.eq.s32.totalorder %s16, 1
    %p118 = por %p116, %p117
    %p119 = scmp.ne.s32.totalorder %s110, %s111
    %p120 = scmp.eq.s32.totalorder %s16, 0
    %p121 = por %p119, %p120
    %p122 = scmp.ne.s32.totalorder %s110, %s111
    %p123 = scmp.eq.s32.totalorder %s17, 1
    %p124 = por %p122, %p123
    %p126 = scmp.ne.s32.totalorder %s111, %s125
    %p127 = scmp.eq.s32.totalorder %s17, 0
    %p128 = por %p126, %p127
    %s129 = ssub.s32 %s11, %s18
    %p130 = scmp.eq.s32.totalorder %s129, 0
    %s132 = sadd.s32 %s131, 1
    %s133 = scalar_select %p130, %s131, %s132
    %p136 = pneg %p130
    %p137 = scmp.eq.s32.totalorder %s11, 1
    %p138 = por %p136, %p137
    %p139 = scmp.ne.s32.totalorder %s131, %s134
    %p140 = scmp.eq.s32.totalorder %s11, 0
    %p141 = por %p139, %p140
    %p142 = scmp.ne.s32.totalorder %s131, %s134
    %p143 = scmp.eq.s32.totalorder %s16, 1
    %p144 = por %p142, %p143
    %p145 = scmp.ne.s32.totalorder %s134, %s135
    %p146 = scmp.eq.s32.totalorder %s16, 0
    %p147 = por %p145, %p146
    %p148 = scmp.ne.s32.totalorder %s134, %s135
    %p149 = scmp.eq.s32.totalorder %s17, 1
    %p150 = por %p148, %p149
    %p152 = scmp.ne.s32.totalorder %s135, %s151
    %p153 = scmp.eq.s32.totalorder %s17, 0
    %p154 = por %p152, %p153
    %p155 = scmp.le.s32.totalorder 1, %s11
    %p156 = scmp.lt.s32.totalorder %s11, 3
    %p157 = pnand %p155, %p156
    %p158 = pneg %p157
    // Predicated region
    $region9: #{tpu_custom_call.1} parent=5 // pred_check
      _
    $region10: #{tpu_custom_call.1} parent=5 // pred_check_branch
      %160 = sbr.rel (%p157) target = $region12
    $region11: #{tpu_custom_call.1} parent=5 // pred_region
      %s161 = ssub.s32 %s11, 1
      // Predicated region
      $region13: #{tpu_custom_call.1} parent=11 // pred_check
        %p162 = pneg %p58
      $region14: #{tpu_custom_call.1} parent=11 // pred_check_branch
        %164 = sbr.rel (%p162) target = $region16
      $region15: #{tpu_custom_call.1} parent=11 // pred_region
        _
      $region16: #{tpu_custom_call.1} parent=11 // pred_fallthru
        _
      // Predicated region
      $region17: #{tpu_custom_call.1} parent=11 // pred_check
        %p165 = pneg %p79
      $region18: #{tpu_custom_call.1} parent=11 // pred_check_branch
        %167 = sbr.rel (%p165) target = $region20
      $region19: #{tpu_custom_call.1} parent=11 // pred_region
        _
      $region20: #{tpu_custom_call.1} parent=11 // pred_fallthru
        _
      // Predicated region
      $region21: #{tpu_custom_call.1} parent=11 // pred_check
        %p168 = pneg %p100
      $region22: #{tpu_custom_call.1} parent=11 // pred_check_branch
        %170 = sbr.rel (%p168) target = $region24
      $region23: #{tpu_custom_call.1} parent=11 // pred_region
        _
      $region24: #{tpu_custom_call.1} parent=11 // pred_fallthru
        _
      // Predicated region
      $region25: #{tpu_custom_call.1} parent=11 // pred_check
        %p171 = pneg %p121
      $region26: #{tpu_custom_call.1} parent=11 // pred_check_branch
        %173 = sbr.rel (%p171) target = $region28
      $region27: #{tpu_custom_call.1} parent=11 // pred_region
        _
      $region28: #{tpu_custom_call.1} parent=11 // pred_fallthru
        _
    $region12: #{tpu_custom_call.1} parent=5 // pred_fallthru
      _
    %p174 = scmp.lt.s32.totalorder %s11, 2
    // Predicated region
    $region29: #{tpu_custom_call.1} parent=5 // pred_check
      %p175 = pneg %p174
    $region30: #{tpu_custom_call.1} parent=5 // pred_check_branch
      %177 = sbr.rel (%p175) target = $region32
    $region31: #{tpu_custom_call.1} parent=5 // pred_region
      // Predicated region
      $region33: #{tpu_custom_call.1} parent=31 // pred_check
        %p178 = pneg %p31
      $region34: #{tpu_custom_call.1} parent=31 // pred_check_branch
        %180 = sbr.rel (%p178) target = $region36
      $region35: #{tpu_custom_call.1} parent=31 // pred_region
        %s181 = smul.u32 2, %s11
        %p182 = scmp.lt.s32.totalorder %s181, 3
        %s183 = scalar_select %p182, %s181, 3
        %s184 = smul.addr %s183, 3
        %s185 = smul.addr %s184, 8
        %s186 = scalar_lea.vmem %s0, %s185
        %s187 = smul.u32 2, %s11
      $region36: #{tpu_custom_call.1} parent=31 // pred_fallthru
        _
    $region32: #{tpu_custom_call.1} parent=5 // pred_fallthru
      _
    %p188 = scmp.le.s32.totalorder 1, %s11
    %p189 = scmp.lt.s32.totalorder %s11, 3
    %p190 = pnand %p188, %p189
    %p191 = pneg %p190
    // Predicated region
    $region37: #{tpu_custom_call.1} parent=5 // pred_check
      _
    $region38: #{tpu_custom_call.1} parent=5 // pred_check_branch
      %193 = sbr.rel (%p190) target = $region40
    $region39: #{tpu_custom_call.1} parent=5 // pred_region
      %s194 = ssub.s32 %s11, 1
      %s195 = smul.u32 2, %s16
      %p196 = scmp.lt.s32.totalorder %s195, 3
      %s197 = scalar_select %p196, %s195, 3
      %s198 = smul.addr %s197, 3
      %s199 = smul.addr %s198, 8
      %s200 = scalar_lea.vmem %s0, %s199
      %p201 = pneg %p37
      %p202 = pneg %p34
      %p203 = pneg %p58
      %p204 = pneg %p55
      %p205 = pneg %p79
      %p206 = pneg %p76
      %p207 = pneg %p100
      %p208 = pneg %p97
      %p209 = pneg %p121
      %p210 = pneg %p118
      %p211 = pneg %p147
      %p212 = pneg %p144
      %s213 = smul.u32 2, %s16
      %p214 = scmp.lt.s32.totalorder %s213, 3
      %s215 = scalar_select %p214, %s213, 3
      %s216 = smul.addr %s215, 2
      %s217 = smul.addr %s216, 8
      %s218 = scalar_lea.vmem %s5, %s217
      %s219 = smul.u32 2, %s16
      %p220 = scmp.lt.s32.totalorder %s219, 3
      %s221 = scalar_select %p220, %s219, 3
      %s222 = smul.addr %s221, 3
      %s223 = smul.addr %s222, 8
      %s224 = scalar_lea.vmem %s0, %s223
      %s225 = smul.u32 2, %s16
      %s226 = smul.u32 2, %s16
      %p227 = scmp.lt.s32.totalorder %s226, 3
      %s228 = scalar_select %p227, %s226, 3
      %s229 = smul.addr %s228, 2
      %s230 = smul.addr %s229, 8
      %s231 = scalar_lea.vmem %s5, %s230
      %s232 = smul.u32 2, %s16
      %v233 = vld [vmem:[%s224] sm:$0xff]
      %v234 = vld [vmem:[%s224 + $0x8] sm:$0xff]
      %v235 = vld [vmem:[%s224 + $0x18] sm:$0xff]
      %v236 = vld [vmem:[%s224 + $0x20] sm:$0xff]
      %v237 = vld [vmem:[%s224 + $0x1] sm:$0xff]
      %v238 = vld [vmem:[%s224 + $0x9] sm:$0xff]
      %v239 = vld [vmem:[%s224 + $0x19] sm:$0xff]
      %v240 = vld [vmem:[%s224 + $0x21] sm:$0xff]
      %v241 = vld [vmem:[%s224 + $0x2] sm:$0xff]
      %v242 = vld [vmem:[%s224 + $0xa] sm:$0xff]
      %v243 = vld [vmem:[%s224 + $0x1a] sm:$0xff]
      %v244 = vld [vmem:[%s224 + $0x22] sm:$0xff]
      %249 = vrot.lane.b32.xlu0 %v237, 8
      %v250 = vpop.permute.xlu0 %249
      %251 = vrot.lane.b32.xlu0 %v238, 8
      %v252 = vpop.permute.xlu0 %251
      %253 = vrot.lane.b32.xlu0 %v239, 8
      %v254 = vpop.permute.xlu0 %253
      %255 = vrot.lane.b32.xlu0 %v240, 8
      %v256 = vpop.permute.xlu0 %255
      %265 = vrot.lane.b32.xlu0 %v241, 16
      %v266 = vpop.permute.xlu0 %265
      %267 = vrot.lane.b32.xlu0 %v242, 16
      %v268 = vpop.permute.xlu0 %267
      %269 = vrot.lane.b32.xlu0 %v243, 16
      %v270 = vpop.permute.xlu0 %269
      %271 = vrot.lane.b32.xlu0 %v244, 16
      %v272 = vpop.permute.xlu0 %271
      %vm277 = vcmask 64512
      %v278 = vsel %vm277, %v233, %v250
      %v279 = vsel %vm277, %v234, %v252
      %v280 = vsel %vm277, %v235, %v254
      %v281 = vsel %vm277, %v236, %v256
      %vm282 = vcmask 130048
      %v283 = vsel %vm282, %v278, %v266
      %v284 = vsel %vm282, %v279, %v268
      %v285 = vsel %vm282, %v280, %v270
      %v286 = vsel %vm282, %v281, %v272
      %v287 = vld [vmem:[%s1] sm:$0xff]
      %v288 = vld [vmem:[%s1 + $0x8] sm:$0xff]
      %v289 = vld [vmem:[%s1 + $0x10] sm:$0xff]
      %v290 = vld [vmem:[%s2] sm:$0x1]
      %v292 = vlaneseq
      %v293 = vshrl.u32 %v292, 7
      %v294 = vsub.s32 0, %v293
      %v295 = vrot.slane %v290, %v294
      %vm297 = vcmask 195584
      %v299 = vsel %vm297, %v283, 0
      %v302 = vsel %vm297, %v284, 0
      %v305 = vsel %vm297, %v285, 0
      %v308 = vsel %vm297, %v286, 0
      %310 = vmatprep.subr.mxu0 0.0
      %311 = vmatpush1.msra.mxu0 %v287
      %312 = vmatprep.subr.mxu0 0.0
      %313 = vmatpush1.msra.mxu0 %v288
      %314 = vmatprep.subr.mxu0 0.0
      %315 = vmatpush1.msra.mxu0 %v289
      %316 = vmatprep.subr.mxu0 0.0
      %317 = vmatpush1.msra.mxu0 0.0
      %318 = vmatprep.subr.mxu0 0.0
      %319 = vmatpush1.msra.mxu0 0.0
      %320 = vmatprep.subr.mxu0 0.0
      %321 = vmatpush1.msra.mxu0 0.0
      %322 = vmatprep.subr.mxu0 0.0
      %323 = vmatpush1.msra.mxu0 0.0
      %324 = vmatprep.subr.mxu0 0.0
      %325 = vmatpush1.msra.mxu0 0.0
      %326 = vmatprep.subr.mxu0 0.0
      %327 = vmatpush1.msra.mxu0 0.0
      %328 = vmatprep.subr.mxu0 0.0
      %329 = vmatpush1.msra.mxu0 0.0
      %330 = vmatprep.subr.mxu0 0.0
      %331 = vmatpush1.msra.mxu0 0.0
      %332 = vmatprep.subr.mxu0 0.0
      %333 = vmatpush1.msra.mxu0 0.0
      %334 = vmatprep.subr.mxu0 0.0
      %335 = vmatpush1.msra.mxu0 0.0
      %336 = vmatprep.subr.mxu0 0.0
      %337 = vmatpush1.msra.mxu0 0.0
      %338 = vmatprep.subr.mxu0 0.0
      %339 = vmatpush1.msra.mxu0 0.0
      %340 = vmatprep.subr.mxu0 0.0
      %341 = vmatpush1.msra.mxu0 0.0
      %342 = vmatprep.subr.mxu0 0.0
      %343 = vmatpush1.msra.mxu0 0.0
      %344 = vmatprep.subr.mxu0 0.0
      %345 = vmatpush1.msra.mxu0 0.0
      %346 = vmatprep.subr.mxu0 0.0
      %347 = vmatpush1.msra.mxu0 0.0
      %348 = vmatprep.subr.mxu0 0.0
      %349 = vmatpush1.msra.mxu0 0.0
      %350 = vmatprep.subr.mxu0 0.0
      %351 = vmatpush1.msra.mxu0 0.0
      %352 = vmatprep.subr.mxu0 0.0
      %353 = vmatpush1.msra.mxu0 0.0
      %354 = vmatprep.subr.mxu0 0.0
      %355 = vmatpush1.msra.mxu0 0.0
      %356 = vmatprep.subr.mxu0 0.0
      %357 = vmatpush1.msra.mxu0 0.0
      %358 = vmatprep.subr.mxu0 0.0
      %359 = vmatpush1.msra.mxu0 0.0
      %360 = vmatprep.subr.mxu0 0.0
      %361 = vmatpush1.msra.mxu0 0.0
      %362 = vmatprep.subr.mxu0 0.0
      %363 = vmatpush1.msra.mxu0 0.0
      %364 = vmatprep.subr.mxu0 0.0
      %365 = vmatpush1.msra.mxu0 0.0
      %366 = vmatprep.subr.mxu0 0.0
      %367 = vmatpush1.msra.mxu0 0.0
      %368 = vmatprep.subr.mxu0 0.0
      %369 = vmatpush1.msra.mxu0 0.0
      %370 = vmatprep.subr.mxu0 0.0
      %371 = vmatpush1.msra.mxu0 0.0
      %372 = vmatprep.subr.mxu0 0.0
      %373 = vmatpush1.msra.mxu0 0.0
      %374 = vmatprep.mubr.f32.mxu0 0.0
      %375 = vmatmul.mubr.f32.gmra.mrb[0].mxu0 %v299
      %v376 = vpop.f32.mrb[0].mxu0
      %v377 = vadd.f32 %v295, %v376
      %v378 = vpop.f32.mrb[0].mxu0
      %379 = vmatprep.mubr.f32.mxu0 0.0
      %380 = vmatmul.mubr.f32.gmra.mrb[0].mxu0 %v302
      %v381 = vpop.f32.mrb[0].mxu0
      %v382 = vadd.f32 %v295, %v381
      %v383 = vpop.f32.mrb[0].mxu0
      %384 = vmatprep.mubr.f32.mxu0 0.0
      %385 = vmatmul.mubr.f32.gmra.mrb[0].mxu0 %v305
      %v386 = vpop.f32.mrb[0].mxu0
      %v387 = vadd.f32 %v295, %v386
      %v388 = vpop.f32.mrb[0].mxu0
      %389 = vmatprep.mubr.f32.mxu0 0.0
      %390 = vmatmul.mubr.f32.gmra.mrb[0].mxu0 %v308
      %v391 = vpop.f32.mrb[0].mxu0
      %v392 = vadd.f32 %v295, %v391
      %v393 = vpop.f32.mrb[0].mxu0
      %394 = vdwg.mxu0
      %v395 = vmax.f32 %v377, 0.0
      %v396 = vmax.f32 %v382, 0.0
      %v397 = vmax.f32 %v387, 0.0
      %v398 = vmax.f32 %v392, 0.0
      %vm403 = vcmask 1040384
      %v404 = vrot.slane %v395, 7
      %v405 = vrot.slane %v396, 7
      %v406 = vsel %vm403, %v404, %v405
      %v407 = vrot.slane %v397, 7
      %v408 = vrot.slane %v398, 7
      %v409 = vsel %vm403, %v407, %v408
      %v416 = vsel %vm403, 0.0, %v404
      %v417 = vsel %vm403, 0.0, %v407
      %v418 = vsel %vm403, %v405, 0.0
      %v419 = vsel %vm403, %v408, 0.0
      %vm424 = vcmask 1046528
      %v425 = vrot.slane %v416, 1
      %v426 = vrot.slane %v406, 1
      %v427 = vsel %vm424, %v425, %v426
      %v428 = vrot.slane %v418, 1
      %v429 = vsel %vm424, %v426, %v428
      %v430 = vrot.slane %v417, 1
      %v431 = vrot.slane %v409, 1
      %v432 = vsel %vm424, %v430, %v431
      %v433 = vrot.slane %v419, 1
      %v434 = vsel %vm424, %v431, %v433
      %435 = vrot.lane.b32.xlu0 %v427, 8
      %v436 = vpop.permute.xlu0 %435
      %437 = vrot.lane.b32.xlu0 %v429, 8
      %v438 = vpop.permute.xlu0 %437
      %439 = vrot.lane.b32.xlu0 %v432, 8
      %v440 = vpop.permute.xlu0 %439
      %441 = vrot.lane.b32.xlu0 %v434, 8
      %v442 = vpop.permute.xlu0 %441
      %vm447 = vcmask 1045504
      %v448 = vrot.slane %v416, 2
      %v449 = vrot.slane %v406, 2
      %v450 = vsel %vm447, %v448, %v449
      %v451 = vrot.slane %v418, 2
      %v452 = vsel %vm447, %v449, %v451
      %v453 = vrot.slane %v417, 2
      %v454 = vrot.slane %v409, 2
      %v455 = vsel %vm447, %v453, %v454
      %v456 = vrot.slane %v419, 2
      %v457 = vsel %vm447, %v454, %v456
      %458 = vrot.lane.b32.xlu0 %v450, 16
      %v459 = vpop.permute.xlu0 %458
      %460 = vrot.lane.b32.xlu0 %v452, 16
      %v461 = vpop.permute.xlu0 %460
      %462 = vrot.lane.b32.xlu0 %v455, 16
      %v463 = vpop.permute.xlu0 %462
      %464 = vrot.lane.b32.xlu0 %v457, 16
      %v465 = vpop.permute.xlu0 %464
      %v470 = vsel %vm277, %v416, %v436
      %v471 = vsel %vm277, %v406, %v438
      %v472 = vsel %vm277, %v417, %v440
      %v473 = vsel %vm277, %v409, %v442
      %v474 = vsel %vm282, %v470, %v459
      %v475 = vsel %vm282, %v471, %v461
      %v476 = vsel %vm282, %v472, %v463
      %v477 = vsel %vm282, %v473, %v465
      %v478 = vld [vmem:[%s3] sm:$0xff]
      %v479 = vld [vmem:[%s3 + $0x8] sm:$0xff]
      %v480 = vld [vmem:[%s3 + $0x10] sm:$0xff]
      %v481 = vld [vmem:[%s4] sm:$0x1]
      %v483 = vlaneseq
      %v484 = vshrl.u32 %v483, 7
      %v485 = vsub.s32 0, %v484
      %v486 = vrot.slane %v481, %v485
      %v489 = vsel %vm297, %v474, 0
      %v492 = vsel %vm297, %v475, 0
      %v495 = vsel %vm297, %v476, 0
      %v498 = vsel %vm297, %v477, 0
      %500 = vmatprep.subr.mxu0 0.0
      %501 = vmatpush1.msra.mxu0 %v478
      %502 = vmatprep.subr.mxu0 0.0
      %503 = vmatpush1.msra.mxu0 %v479
      %504 = vmatprep.subr.mxu0 0.0
      %505 = vmatpush1.msra.mxu0 %v480
      %506 = vmatprep.subr.mxu0 0.0
      %507 = vmatpush1.msra.mxu0 0.0
      %508 = vmatprep.subr.mxu0 0.0
      %509 = vmatpush1.msra.mxu0 0.0
      %510 = vmatprep.subr.mxu0 0.0
      %511 = vmatpush1.msra.mxu0 0.0
      %512 = vmatprep.subr.mxu0 0.0
      %513 = vmatpush1.msra.mxu0 0.0
      %514 = vmatprep.subr.mxu0 0.0
      %515 = vmatpush1.msra.mxu0 0.0
      %516 = vmatprep.subr.mxu0 0.0
      %517 = vmatpush1.msra.mxu0 0.0
      %518 = vmatprep.subr.mxu0 0.0
      %519 = vmatpush1.msra.mxu0 0.0
      %520 = vmatprep.subr.mxu0 0.0
      %521 = vmatpush1.msra.mxu0 0.0
      %522 = vmatprep.subr.mxu0 0.0
      %523 = vmatpush1.msra.mxu0 0.0
      %524 = vmatprep.subr.mxu0 0.0
      %525 = vmatpush1.msra.mxu0 0.0
      %526 = vmatprep.subr.mxu0 0.0
      %527 = vmatpush1.msra.mxu0 0.0
      %528 = vmatprep.subr.mxu0 0.0
      %529 = vmatpush1.msra.mxu0 0.0
      %530 = vmatprep.subr.mxu0 0.0
      %531 = vmatpush1.msra.mxu0 0.0
      %532 = vmatprep.subr.mxu0 0.0
      %533 = vmatpush1.msra.mxu0 0.0
      %534 = vmatprep.subr.mxu0 0.0
      %535 = vmatpush1.msra.mxu0 0.0
      %536 = vmatprep.subr.mxu0 0.0
      %537 = vmatpush1.msra.mxu0 0.0
      %538 = vmatprep.subr.mxu0 0.0
      %539 = vmatpush1.msra.mxu0 0.0
      %540 = vmatprep.subr.mxu0 0.0
      %541 = vmatpush1.msra.mxu0 0.0
      %542 = vmatprep.subr.mxu0 0.0
      %543 = vmatpush1.msra.mxu0 0.0
      %544 = vmatprep.subr.mxu0 0.0
      %545 = vmatpush1.msra.mxu0 0.0
      %546 = vmatprep.subr.mxu0 0.0
      %547 = vmatpush1.msra.mxu0 0.0
      %548 = vmatprep.subr.mxu0 0.0
      %549 = vmatpush1.msra.mxu0 0.0
      %550 = vmatprep.subr.mxu0 0.0
      %551 = vmatpush1.msra.mxu0 0.0
      %552 = vmatprep.subr.mxu0 0.0
      %553 = vmatpush1.msra.mxu0 0.0
      %554 = vmatprep.subr.mxu0 0.0
      %555 = vmatpush1.msra.mxu0 0.0
      %556 = vmatprep.subr.mxu0 0.0
      %557 = vmatpush1.msra.mxu0 0.0
      %558 = vmatprep.subr.mxu0 0.0
      %559 = vmatpush1.msra.mxu0 0.0
      %560 = vmatprep.subr.mxu0 0.0
      %561 = vmatpush1.msra.mxu0 0.0
      %562 = vmatprep.subr.mxu0 0.0
      %563 = vmatpush1.msra.mxu0 0.0
      %564 = vmatprep.mubr.f32.mxu0 0.0
      %565 = vmatmul.mubr.f32.gmra.mrb[0].mxu0 %v489
      %v566 = vpop.f32.mrb[0].mxu0
      %v567 = vadd.f32 %v486, %v566
      %v568 = vpop.f32.mrb[0].mxu0
      %569 = vmatprep.mubr.f32.mxu0 0.0
      %570 = vmatmul.mubr.f32.gmra.mrb[0].mxu0 %v492
      %v571 = vpop.f32.mrb[0].mxu0
      %v572 = vadd.f32 %v486, %v571
      %v573 = vpop.f32.mrb[0].mxu0
      %574 = vmatprep.mubr.f32.mxu0 0.0
      %575 = vmatmul.mubr.f32.gmra.mrb[0].mxu0 %v495
      %v576 = vpop.f32.mrb[0].mxu0
      %v577 = vadd.f32 %v486, %v576
      %v578 = vpop.f32.mrb[0].mxu0
      %579 = vmatprep.mubr.f32.mxu0 0.0
      %580 = vmatmul.mubr.f32.gmra.mrb[0].mxu0 %v498
      %v581 = vpop.f32.mrb[0].mxu0
      %v582 = vadd.f32 %v486, %v581
      %v583 = vpop.f32.mrb[0].mxu0
      %584 = vdwg.mxu0
      %v585 = vadd.f32 %v567, %v237
      %v586 = vadd.f32 %v572, %v238
      %v587 = vadd.f32 %v577, %v239
      %v588 = vadd.f32 %v582, %v240
      %v589 = vmax.f32 %v585, 0.0
      %v590 = vmax.f32 %v586, 0.0
      %v591 = vmax.f32 %v587, 0.0
      %v592 = vmax.f32 %v588, 0.0
      %593 = vst.msk [vmem:[%s231] sm:$0xff] %vm277, %v589
      %594 = vst.msk [vmem:[%s231 + $0x8] sm:$0xff] %vm277, %v590
      %595 = vst.msk [vmem:[%s231 + $0x10] sm:$0xff] %vm277, %v591
      %596 = vst.msk [vmem:[%s231 + $0x18] sm:$0xff] %vm277, %v592
      %s597 = smul.u32 2, %s16
      %p598 = scmp.lt.s32.totalorder %s597, 3
      %s599 = scalar_select %p598, %s597, 3
      %s600 = smul.addr %s599, 2
      %s601 = smul.addr %s600, 8
      %s602 = scalar_lea.vmem %s5, %s601
      // Predicated region
      $region41: #{tpu_custom_call.1} parent=39 // pred_check
        %p603 = pneg %p144
      $region42: #{tpu_custom_call.1} parent=39 // pred_check_branch
        %605 = sbr.rel (%p603) target = $region44
      $region43: #{tpu_custom_call.1} parent=39 // pred_region
        %s606 = smul.u32 2, %s16
      $region44: #{tpu_custom_call.1} parent=39 // pred_fallthru
        _
    $region40: #{tpu_custom_call.1} parent=5 // pred_fallthru
      _
    %p607 = scmp.le.s32.totalorder 2, %s11
    // Predicated region
    $region45: #{tpu_custom_call.1} parent=5 // pred_check
      %p608 = pneg %p607
    $region46: #{tpu_custom_call.1} parent=5 // pred_check_branch
      %610 = sbr.rel (%p608) target = $region48
    $region47: #{tpu_custom_call.1} parent=5 // pred_region
      %s611 = ssub.s32 %s11, 2
      // Predicated region
      $region49: #{tpu_custom_call.1} parent=47 // pred_check
        %p612 = pneg %p150
      $region50: #{tpu_custom_call.1} parent=47 // pred_check_branch
        %614 = sbr.rel (%p612) target = $region52
      $region51: #{tpu_custom_call.1} parent=47 // pred_region
        %s615 = smul.u32 2, %s17
        %p616 = scmp.lt.s32.totalorder %s615, 3
        %s617 = scalar_select %p616, %s615, 3
        %s618 = smul.addr %s617, 2
        %s619 = smul.addr %s618, 8
        %s620 = scalar_lea.vmem %s5, %s619
      $region52: #{tpu_custom_call.1} parent=47 // pred_fallthru
        _
    $region48: #{tpu_custom_call.1} parent=5 // pred_fallthru
      _
  $region6: #{tpu_custom_call.1} parent=0 // loop_footer
    %s15 = sadd.s32 1, %s11
  $region7: #{tpu_custom_call.1} parent=0 // loop_footer_branch
    %10 = sbr.rel target = $region3
  $region8: #{tpu_custom_call.1} parent=0 // loop_exit
    _

</llo_original>
